<compile_context>
chip_gen: v7x
topology: tpu7x:2x2x1
jax: 0.10.0
libtpu: 0.0.40
codegen_flags: <defaults>
</compile_context>

<pallas_src>
import functools

import jax
import jax.numpy as jnp
from jax.experimental import pallas as pl
from jax.experimental.pallas import tpu as pltpu


def _vmem_capacity_bytes():
    """Best-effort per-core VMEM capacity; conservative v7x fallback."""
    try:
        return int(pltpu.get_tpu_info().vmem_capacity_bytes)
    except Exception:
        return 64 * 1024 * 1024


# ---------------------------------------------------------------------------
# Kernel: one body handles both branches (static `use_ib` flag).
# Block layout: logits (TILE_N, C) with classes on the lane axis; per-sample
# quantities are (TILE_N, 1) columns; per-tile partial sum -> (1, 1, 128) out.
# ---------------------------------------------------------------------------
def _loss_tiles_kernel(*refs, use_ib, alpha, epsilon, gamma,
                       n_valid, tile_n, need_mask):
    if use_ib:
        logits_ref, target_ref, feat_ref, wtgt_ref, out_ref = refs
    else:
        logits_ref, target_ref, out_ref = refs

    logits = logits_ref[...].astype(jnp.float32)         # (T, C)
    tgt = target_ref[...]                                 # (T, 1) int32
    t, c = logits.shape

    # numerically stable log-sum-exp over the class (lane) axis
    m = jnp.max(logits, axis=1, keepdims=True)                        # (T, 1)
    shifted = logits - m                                              # (T, C)
    lse = jnp.log(jnp.sum(jnp.exp(shifted), axis=1, keepdims=True))   # (T, 1)

    # single one-hot-masked pass: pick shifted[target] (weight[target] arrives
    # pre-gathered from the wrapper, so this is the only other reduction).
    classes = jax.lax.broadcasted_iota(jnp.int32, (t, c), 1)
    onehot = classes == tgt                                           # (T, C)
    shifted_t = jnp.sum(jnp.where(onehot, shifted, 0.0),
                        axis=1, keepdims=True)                        # (T, 1)
    ce_unw = lse - shifted_t           # unweighted CE = -log_softmax[target]

    if use_ib:
        feat = feat_ref[...].astype(jnp.float32)                      # (T, 1)
        w_t = wtgt_ref[...].astype(jnp.float32)                       # (T, 1)

        # grads = sum_c |softmax - onehot| = 2*(1 - softmax[target]),
        # softmax[target] = exp(-ce_unw): no softmax / abs / extra reduction.
        p_t = jnp.exp(-ce_unw)
        grads = 2.0 * (1.0 - p_t)

        # per-row only -> keep the exact divide (approx reciprocal would put
        # ~1e-3 relative error on the dominant `ib` factor).
        ib = alpha / (grads * feat + epsilon)

        ce_w = ce_unw * w_t              # F.cross_entropy(..., weight, 'none')
        if gamma == 0.0:                 # static: modulator == 1, skip exp/pow
            loss_vec = ce_w * ib
        else:
            one_minus_p = 1.0 - jnp.exp(-ce_w)
            if float(gamma).is_integer():
                modulator = one_minus_p ** int(gamma)      # lax.integer_pow
            else:
                modulator = jnp.exp(
                    gamma * jnp.log(jnp.maximum(one_minus_p, 1e-30)))
            loss_vec = modulator * ce_w * ib
    else:
        loss_vec = ce_unw                # plain unweighted cross-entropy

    if need_mask:  # static flag: only emitted when the last tile is ragged
        row = tile_n * pl.program_id(0) + jax.lax.broadcasted_iota(
            jnp.int32, (t, 1), 0)
        loss_vec = jnp.where(row < n_valid, loss_vec, 0.0)

    # Per-tile partial sum, broadcast into a lane-dense (1,1,128) output row.
    # Each grid step owns a distinct output block -> batch axis is "parallel".
    out_ref[...] = jnp.full(out_ref.shape, jnp.sum(loss_vec),
                            dtype=jnp.float32)


# ---------------------------------------------------------------------------
# Pure-JAX forward: fused-XLA fast path for tiny / small-C inputs, and the
# reference used for self-testing.
# ---------------------------------------------------------------------------
def _fused_xla_loss(logits, target, features, weight, alpha, epsilon, gamma,
                    use_ib):
    logits = logits.astype(jnp.float32)
    target = target.astype(jnp.int32)
    log_sm = jax.nn.log_softmax(logits, axis=1)
    ce_unw = -jnp.take_along_axis(log_sm, target[:, None], axis=1)[:, 0]
    if not use_ib:
        return jnp.mean(ce_unw)
    sm = jax.nn.softmax(logits, axis=1)
    oh = jax.nn.one_hot(target, logits.shape[1], dtype=jnp.float32)
    grads = jnp.sum(jnp.abs(sm - oh), axis=1)
    ib = alpha / (grads * features.reshape(-1).astype(jnp.float32) + epsilon)
    ce = ce_unw * weight[target]
    if gamma == 0.0:
        mod = jnp.ones_like(ce)
    else:
        mod = (1.0 - jnp.exp(-ce)) ** gamma
    return jnp.mean(mod * ce * ib)


# ---------------------------------------------------------------------------
# Module wrapper
# ---------------------------------------------------------------------------
class IBFocalLossPallas:
    """JAX/Pallas port of IB_FocalLoss.forward.

    `epoch` selects the branch statically (a concrete Python int), exactly
    like the PyTorch module's Python `if`.  Both branches normalize by N,
    matching reduction='none' + .mean() (IB branch) and the default 'mean'
    (warm-up branch) of the reference.
    """

    def __init__(self, cls_num_list, alpha=10000.0, gamma=0.0,
                 start_ib_epoch=100, tile_n=None):
        assert alpha > 0
        self.alpha = float(alpha)
        self.epsilon = 0.001
        self.gamma = float(gamma)
        self.start_ib_epoch = int(start_ib_epoch)
        self.tile_n = tile_n
        cls_num_list = jnp.asarray(cls_num_list, dtype=jnp.float32)
        # Exactly the reference formula:
        #   weight = 1 / cls_num_list / sum(cls_num_list) * len(cls_num_list)
        self.weight = (1.0 / cls_num_list / jnp.sum(cls_num_list)
                       * cls_num_list.shape[0])
        vmem_cap = _vmem_capacity_bytes()
        # Per-block byte budget: the byte budget (not a row cap) governs the
        # tile.  vmem/8 -> ~8 MiB blocks on v7x (64 MiB VMEM), ~16 MiB on
        # v5e/v6e (128 MiB); double-buffered logits = 2 blocks <= vmem/4.
        self._block_budget = int(min(16 << 20, max(4 << 20, vmem_cap // 8)))
        self._vmem_cap = int(vmem_cap)

    # -- tile-size policy -------------------------------------------------
    def _pick_tile_n(self, n, c, itemsize):
        if n <= 8:
            return n                    # block dim == full array dim (legal)
        cap = (n // 8) * 8              # keep sublane block dim inside array
        if self.tile_n is not None:
            tile = int(self.tile_n)
        else:
            tile = self._block_budget // (itemsize * c)   # byte budget rules
            if n * c * itemsize >= (4 << 20):
                # Batch big enough to amortize an extra ~0.35us grid step:
                # force >= 2 balanced steps so the "parallel" axis shards
                # across both v7x TensorCores (harmless on v5e/v6e).
                tile = min(tile, (((n + 1) // 2 + 7) // 8) * 8)
        return max(8, min(cap, (tile // 8) * 8))

    # -- Pallas path -------------------------------------------------------
    def _pallas_loss(self, logits, target, features, use_ib):
        n, c = logits.shape
        itemsize = jnp.dtype(logits.dtype).itemsize
        tile_n = self._pick_tile_n(n, c, itemsize)
        num_tiles = -(-n // tile_n)
        need_mask = (num_tiles * tile_n != n)   # ragged last block only

        # No jnp.pad of the big (N, C) logits: ragged last blocks are handled
        # by the in-kernel row mask, avoiding an extra HBM write+read pass.
        target2d = target.astype(jnp.int32).reshape(n, 1)
        inputs = [logits, target2d]
        in_specs = [
            pl.BlockSpec((tile_n, c), lambda i: (i, 0)),
            pl.BlockSpec((tile_n, 1), lambda i: (i, 0)),
        ]
        if use_ib:
            feat2d = features.reshape(n, 1).astype(jnp.float32)
            # Pre-gather weight[target] (tiny (N,) XLA gather) so the kernel
            # keeps only two cross-lane reductions per tile (max, sum-exp)
            # plus the one-hot extraction.
            wtgt2d = self.weight[target.astype(jnp.int32)].reshape(n, 1)
            inputs += [feat2d, wtgt2d]
            in_specs += [
                pl.BlockSpec((tile_n, 1), lambda i: (i, 0)),
                pl.BlockSpec((tile_n, 1), lambda i: (i, 0)),
            ]

        kernel = functools.partial(
            _loss_tiles_kernel, use_ib=use_ib, alpha=self.alpha,
            epsilon=self.epsilon, gamma=self.gamma, n_valid=n,
            tile_n=tile_n, need_mask=need_mask)

        block_bytes = tile_n * c * itemsize
        # Double-buffered logits blocks + generous slack for the small column
        # inputs / output / internal scratch; safe on every generation.
        vmem_limit = int(min(128 << 20,
                             max(32 << 20, 2 * block_bytes + (8 << 20))))

        partials = pl.pallas_call(
            kernel,
            out_shape=jax.ShapeDtypeStruct((num_tiles, 1, 128), jnp.float32),
            grid=(num_tiles,),
            in_specs=in_specs,
            out_specs=pl.BlockSpec((1, 1, 128), lambda i: (i, 0, 0)),
            compiler_params=pltpu.CompilerParams(
                dimension_semantics=("parallel",),
                vmem_limit_bytes=vmem_limit),
        )(*inputs)

        return jnp.sum(partials[:, 0, 0]) / n

    # -- forward -----------------------------------------------------------
    def __call__(self, logits, target, features, epoch):
        # Static branch selection (concrete Python int), like the reference.
        use_ib = int(epoch) >= self.start_ib_epoch
        n, c = logits.shape
        # Fast path: tiny problems (pallas_call overhead dominates) or C < 128
        # (classes-on-lanes layout would waste 7/8 of every vreg row) go to a
        # fused XLA expression.
        # TODO(synk): add a (C, N)-transposed kernel variant for 8 <= C < 128
        # at large N; those shapes currently take the fused-XLA path.
        if c < 128 or n * c < 16384:
            return _fused_xla_loss(logits, target, features, self.weight,
                                   self.alpha, self.epsilon, self.gamma,
                                   use_ib)
        return self._pallas_loss(logits, target, features, use_ib)


# ---------------------------------------------------------------------------
if __name__ == "__main__":
    # Small but lane-dense shapes: 300 samples x 128 classes, so the tiled /
    # ragged-mask / partial-sum / "parallel" path is actually exercised.
    N, C = 300, 128
    key = jax.random.PRNGKey(0)
    k1, k2, k3 = jax.random.split(key, 3)
    logits = jax.random.normal(k1, (N, C), dtype=jnp.float32)
    target = jax.random.randint(k2, (N,), 0, C, dtype=jnp.int32)
    features = jnp.abs(jax.random.normal(k3, (N, 1), dtype=jnp.float32)) + 0.5
    cls_num_list = jnp.asarray([10.0 * C - 5.0 * i for i in range(C)],
                               dtype=jnp.float32)

    def check(mod, epoch, name, lg=logits, rtol=5e-4):
        use_ib = epoch >= mod.start_ib_epoch
        out = jax.block_until_ready(mod(lg, target, features, epoch))
        ref = jax.block_until_ready(
            _fused_xla_loss(lg, target, features, mod.weight, mod.alpha,
                            mod.epsilon, mod.gamma, use_ib))
        assert jnp.allclose(out, ref, rtol=rtol, atol=1e-6), (name, out, ref)

    # IB branch, gamma = 0, explicit tile_n=128 -> 3-step grid, ragged last.
    check(IBFocalLossPallas(cls_num_list, alpha=10000.0, gamma=0.0,
                            start_ib_epoch=100, tile_n=128), 150, "ib_gamma0")
    # IB branch, gamma = 2 (exercises the focal modulator path).
    check(IBFocalLossPallas(cls_num_list, alpha=10000.0, gamma=2.0,
                            start_ib_epoch=100, tile_n=128), 150, "ib_gamma2")
    # Warm-up branch: plain unweighted mean cross-entropy.
    check(IBFocalLossPallas(cls_num_list, alpha=10000.0, gamma=0.0,
                            start_ib_epoch=100, tile_n=128), 5, "plain_ce")
    # Automatic (byte-budget) tile policy, ragged tail without any padding.
    check(IBFocalLossPallas(cls_num_list, alpha=10000.0, gamma=0.0,
                            start_ib_epoch=100), 150, "ib_auto_tile")
    # bf16 logits stream straight into the kernel (upcast per tile only).
    check(IBFocalLossPallas(cls_num_list, alpha=10000.0, gamma=0.0,
                            start_ib_epoch=100), 150, "ib_bf16",
          lg=logits.astype(jnp.bfloat16), rtol=1e-3)

    # Tiny-shape / small-C inputs route to the fused-XLA fast path by design.
    tiny = IBFocalLossPallas(
        jnp.asarray([100.0 - 5.0 * i for i in range(16)], dtype=jnp.float32))
    small_out = jax.block_until_ready(
        tiny(logits[:8, :16], target[:8] % 16, features[:8], 150))
    assert bool(jnp.isfinite(small_out))

    print("KERNEL_OK")
</pallas_src>

<mosaic_0001>
module attributes {stable_mosaic.version = 11 : i64} {
  func.func @_loss_tiles_kernel(%arg0: i32, %arg1: memref<128x128xf32, #tpu.memory_space<vmem>>, %arg2: memref<128x1xi32, #tpu.memory_space<vmem>>, %arg3: memref<128x1xf32, #tpu.memory_space<vmem>>, %arg4: memref<128x1xf32, #tpu.memory_space<vmem>>, %arg5: memref<1x1x128xf32, #tpu.memory_space<vmem>>) attributes {dimension_semantics = [#tpu.dimension_semantics<parallel>], iteration_bounds = array<i64: 3>, scalar_prefetch = 0 : i64, scratch_operands = 0 : i64, tpu.core_type = #tpu.core_type<tc>, window_params = [{transform_indices = @transform_0, window_bounds = array<i64: 128, 128>}, {transform_indices = @transform_1, window_bounds = array<i64: 128, 1>}, {transform_indices = @transform_2, window_bounds = array<i64: 128, 1>}, {transform_indices = @transform_3, window_bounds = array<i64: 128, 1>}, {transform_indices = @transform_4, window_bounds = array<i64: 1, 1, 128>}]} {
    %c0 = arith.constant 0 : index
    %c0_0 = arith.constant 0 : index
    %0 = vector.load %arg1[%c0, %c0_0] : memref<128x128xf32, #tpu.memory_space<vmem>>, vector<128x128xf32>
    %c0_1 = arith.constant 0 : index
    %c0_2 = arith.constant 0 : index
    %1 = vector.load %arg2[%c0_1, %c0_2] : memref<128x1xi32, #tpu.memory_space<vmem>>, vector<128x1xi32>
    %cst = arith.constant dense<0xFF800000> : vector<128xf32>
    %2 = vector.multi_reduction <maximumf>, %0, %cst [1] : vector<128x128xf32> to vector<128xf32>
    %3 = vector.shape_cast %2 : vector<128xf32> to vector<128x1xf32>
    %4 = vector.broadcast %3 : vector<128x1xf32> to vector<128x128xf32>
    %5 = arith.subf %0, %4 : vector<128x128xf32>
    %6 = math.exp %5 : vector<128x128xf32>
    %cst_3 = arith.constant dense<0.000000e+00> : vector<128xf32>
    %7 = vector.multi_reduction <add>, %6, %cst_3 [1] : vector<128x128xf32> to vector<128xf32>
    %8 = vector.shape_cast %7 : vector<128xf32> to vector<128x1xf32>
    %9 = math.log %8 : vector<128x1xf32>
    %10 = tpu.iota {dimensions = array<i32: 1>} : vector<128x128xi32>
    %11 = vector.broadcast %1 : vector<128x1xi32> to vector<128x128xi32>
    %12 = arith.cmpi eq, %10, %11 : vector<128x128xi32>
    %cst_4 = arith.constant 0.000000e+00 : f32
    %13 = vector.broadcast %cst_4 : f32 to vector<128x128xf32>
    %14 = arith.select %12, %5, %13 : vector<128x128xi1>, vector<128x128xf32>
    %cst_5 = arith.constant dense<0.000000e+00> : vector<128xf32>
    %15 = vector.multi_reduction <add>, %14, %cst_5 [1] : vector<128x128xf32> to vector<128xf32>
    %16 = vector.shape_cast %15 : vector<128xf32> to vector<128x1xf32>
    %17 = arith.subf %9, %16 : vector<128x1xf32>
    %c0_6 = arith.constant 0 : index
    %c0_7 = arith.constant 0 : index
    %18 = vector.load %arg3[%c0_6, %c0_7] : memref<128x1xf32, #tpu.memory_space<vmem>>, vector<128x1xf32>
    %c0_8 = arith.constant 0 : index
    %c0_9 = arith.constant 0 : index
    %19 = vector.load %arg4[%c0_8, %c0_9] : memref<128x1xf32, #tpu.memory_space<vmem>>, vector<128x1xf32>
    %cst_10 = arith.constant 0.000000e+00 : f32
    %20 = vector.broadcast %cst_10 : f32 to vector<128x1xf32>
    %21 = arith.subf %20, %17 : vector<128x1xf32>
    %22 = math.exp %21 : vector<128x1xf32>
    %cst_11 = arith.constant 1.000000e+00 : f32
    %23 = vector.broadcast %cst_11 : f32 to vector<128x1xf32>
    %24 = arith.subf %23, %22 : vector<128x1xf32>
    %cst_12 = arith.constant 2.000000e+00 : f32
    %25 = vector.broadcast %cst_12 : f32 to vector<128x1xf32>
    %26 = arith.mulf %25, %24 : vector<128x1xf32>
    %27 = arith.mulf %26, %18 : vector<128x1xf32>
    %cst_13 = arith.constant 1.000000e-03 : f32
    %28 = vector.broadcast %cst_13 : f32 to vector<128x1xf32>
    %29 = arith.addf %27, %28 : vector<128x1xf32>
    %cst_14 = arith.constant 1.000000e+04 : f32
    %30 = vector.broadcast %cst_14 : f32 to vector<128x1xf32>
    %31 = arith.divf %30, %29 : vector<128x1xf32>
    %32 = arith.mulf %17, %19 : vector<128x1xf32>
    %33 = arith.mulf %32, %31 : vector<128x1xf32>
    %c128_i32 = arith.constant 128 : i32
    %34 = arith.muli %c128_i32, %arg0 : i32
    %35 = tpu.iota {dimensions = array<i32: 0>} : vector<128x1xi32>
    %36 = vector.broadcast %34 : i32 to vector<128x1xi32>
    %37 = arith.addi %36, %35 : vector<128x1xi32>
    %c300_i32 = arith.constant 300 : i32
    %38 = vector.broadcast %c300_i32 : i32 to vector<128x1xi32>
    %39 = arith.cmpi slt, %37, %38 : vector<128x1xi32>
    %cst_15 = arith.constant 0.000000e+00 : f32
    %40 = vector.broadcast %cst_15 : f32 to vector<128x1xf32>
    %41 = arith.select %39, %33, %40 : vector<128x1xi1>, vector<128x1xf32>
    %42 = vector.shape_cast %41 : vector<128x1xf32> to vector<1x128x1xf32>
    %cst_16 = arith.constant dense<0.000000e+00> : vector<1xf32>
    %43 = vector.multi_reduction <add>, %42, %cst_16 [1, 2] : vector<1x128x1xf32> to vector<1xf32>
    %44 = vector.shape_cast %43 : vector<1xf32> to vector<1x1x1xf32>
    %45 = vector.extract %44[0, 0, 0] : f32 from vector<1x1x1xf32>
    %46 = vector.broadcast %45 : f32 to vector<1x1x128xf32>
    %c0_17 = arith.constant 0 : index
    %c0_18 = arith.constant 0 : index
    %c0_19 = arith.constant 0 : index
    %47 = vector.load %arg5[%c0_17, %c0_18, %c0_19] : memref<1x1x128xf32, #tpu.memory_space<vmem>>, vector<1x1x128xf32>
    tpu.vector_store %arg5[%c0_17, %c0_18, %c0_19], %46 {strides = array<i32>} : memref<1x1x128xf32, #tpu.memory_space<vmem>>, vector<1x1x128xf32>,
    return
  }
  func.func @transform_0(%arg0: i32) -> (i32, i32) {
    %c0_i32 = arith.constant 0 : i32
    %c0_i32_0 = arith.constant 0 : i32
    return %arg0, %c0_i32 : i32, i32
  }
  func.func @transform_1(%arg0: i32) -> (i32, i32) {
    %c0_i32 = arith.constant 0 : i32
    %c0_i32_0 = arith.constant 0 : i32
    return %arg0, %c0_i32 : i32, i32
  }
  func.func @transform_2(%arg0: i32) -> (i32, i32) {
    %c0_i32 = arith.constant 0 : i32
    %c0_i32_0 = arith.constant 0 : i32
    return %arg0, %c0_i32 : i32, i32
  }
  func.func @transform_3(%arg0: i32) -> (i32, i32) {
    %c0_i32 = arith.constant 0 : i32
    %c0_i32_0 = arith.constant 0 : i32
    return %arg0, %c0_i32 : i32, i32
  }
  func.func @transform_4(%arg0: i32) -> (i32, i32, i32) {
    %c0_i32 = arith.constant 0 : i32
    %c0_i32_0 = arith.constant 0 : i32
    %c0_i32_1 = arith.constant 0 : i32
    return %arg0, %c0_i32, %c0_i32_0 : i32, i32, i32
  }
}

</mosaic_0001>

<llo_original>
// kernel: tpu_custom_call.1
$region0: #{tpu_custom_call.1}
  #allocation0 [shape = 'u32[]', space=smem, size = 0x4, offset = 0x4, fixed_abs, tag = 'smem constant byte address 0x4 - core index']
  #allocation1 [shape = 'u32[144,128]{1,0:T(1,128)}', space=vmem, size = 0x12000, scoped, tag = 'internal scratch']
  %s0 = inlined_call_operand.vmem [shape: f32[300,128], index: 0, kind: input, shape index: {}]
  %s1 = inlined_call_operand.vmem [shape: s32[300,1], index: 1, kind: input, shape index: {}]
  %s2 = inlined_call_operand.vmem [shape: f32[300,1], index: 2, kind: input, shape index: {}]
  %s3 = inlined_call_operand.vmem [shape: f32[300,1], index: 3, kind: input, shape index: {}]
  %s4 = inlined_call_operand.hbm [shape: f32[3,1,128], index: 4, kind: output, shape index: {}]
  %s5 = sld [smem:[#allocation0]]
  $region49: #{tpu_custom_call.1} parent=0
    _
  %s7 = ssub.s32 1, %s5
  %s8 = scalar_select 0, %s7, %s5
  $region1: #{tpu_custom_call.1} parent=0
    #allocation2 [shape = 'u8[1024]{0}', space=vmem, size = 0x400, scoped, tag = 'output window, operand 0']
    #allocation3 [shape = 's32[2]{0}', space=sflag, size = 0x8, scoped, tag = 'scoped memory for tpu_custom_call.1']
    %9 = vsyncpa [#allocation3], 0
    %s10 = scalar_lea.sflag [#allocation3], 1
    %11 = vsyncpa %s10, 0
    loop: start=0, step=1, limit=5
    $region2: #{tpu_custom_call.1} parent=1 // loop_pre_header
      _
    $region3: #{tpu_custom_call.1} parent=1 // loop_header
      %s13 = sphi 0, %s17
      %p14 = scmp.ge.s32.totalorder %s13, 5
      %s23 = sphi 0, %s25
      %s26 = sphi 0, %s23
      %s27 = sphi 0, %s26
      %s43 = sphi 0, %s27
      %s49 = sphi 0, %s51
      %s52 = sphi 0, %s49
      %s53 = sphi 0, %s52
      %s69 = sphi 0, %s53
      %s75 = sphi 0, %s77
      %s78 = sphi 0, %s75
      %s79 = sphi 0, %s78
      %s95 = sphi 0, %s79
      %s101 = sphi 0, %s103
      %s104 = sphi 0, %s101
      %s105 = sphi 0, %s104
      %s121 = sphi 0, %s105
      %s127 = sphi 0, %s129
      %s130 = sphi 0, %s127
      %s131 = sphi 0, %s130
      %s147 = sphi 0, %s131
    $region4: #{tpu_custom_call.1} parent=1 // loop_header_branch
      %16 = sbr.rel (%p14) target = $region8
    $region5: #{tpu_custom_call.1} parent=1 // loop_body
      %s18 = ssub.s32 %s13, 1
      %s19 = ssub.s32 %s13, 2
      %s20 = sadd.s32 %s13, 1
      %s21 = ssub.s32 %s13, %s20
      %p22 = scmp.eq.s32.totalorder %s21, 0
      %s24 = sadd.s32 %s23, 1
      %s25 = scalar_select %p22, %s23, %s24
      %p28 = pneg %p22
      %p29 = scmp.eq.s32.totalorder %s13, 2
      %p30 = por %p28, %p29
      %p31 = scmp.ne.s32.totalorder %s23, %s26
      %p32 = scmp.eq.s32.totalorder %s13, 0
      %p33 = por %p31, %p32
      %p34 = scmp.ne.s32.totalorder %s23, %s26
      %p35 = scmp.eq.s32.totalorder %s18, 2
      %p36 = por %p34, %p35
      %p37 = scmp.ne.s32.totalorder %s26, %s27
      %p38 = scmp.eq.s32.totalorder %s18, 0
      %p39 = por %p37, %p38
      %p40 = scmp.ne.s32.totalorder %s26, %s27
      %p41 = scmp.eq.s32.totalorder %s19, 2
      %p42 = por %p40, %p41
      %p44 = scmp.ne.s32.totalorder %s27, %s43
      %p45 = scmp.eq.s32.totalorder %s19, 0
      %p46 = por %p44, %p45
      %s47 = ssub.s32 %s13, %s20
      %p48 = scmp.eq.s32.totalorder %s47, 0
      %s50 = sadd.s32 %s49, 1
      %s51 = scalar_select %p48, %s49, %s50
      %p54 = pneg %p48
      %p55 = scmp.eq.s32.totalorder %s13, 2
      %p56 = por %p54, %p55
      %p57 = scmp.ne.s32.totalorder %s49, %s52
      %p58 = scmp.eq.s32.totalorder %s13, 0
      %p59 = por %p57, %p58
      %p60 = scmp.ne.s32.totalorder %s49, %s52
      %p61 = scmp.eq.s32.totalorder %s18, 2
      %p62 = por %p60, %p61
      %p63 = scmp.ne.s32.totalorder %s52, %s53
      %p64 = scmp.eq.s32.totalorder %s18, 0
      %p65 = por %p63, %p64
      %p66 = scmp.ne.s32.totalorder %s52, %s53
      %p67 = scmp.eq.s32.totalorder %s19, 2
      %p68 = por %p66, %p67
      %p70 = scmp.ne.s32.totalorder %s53, %s69
      %p71 = scmp.eq.s32.totalorder %s19, 0
      %p72 = por %p70, %p71
      %s73 = ssub.s32 %s13, %s20
      %p74 = scmp.eq.s32.totalorder %s73, 0
      %s76 = sadd.s32 %s75, 1
      %s77 = scalar_select %p74, %s75, %s76
      %p80 = pneg %p74
      %p81 = scmp.eq.s32.totalorder %s13, 2
      %p82 = por %p80, %p81
      %p83 = scmp.ne.s32.totalorder %s75, %s78
      %p84 = scmp.eq.s32.totalorder %s13, 0
      %p85 = por %p83, %p84
      %p86 = scmp.ne.s32.totalorder %s75, %s78
      %p87 = scmp.eq.s32.totalorder %s18, 2
      %p88 = por %p86, %p87
      %p89 = scmp.ne.s32.totalorder %s78, %s79
      %p90 = scmp.eq.s32.totalorder %s18, 0
      %p91 = por %p89, %p90
      %p92 = scmp.ne.s32.totalorder %s78, %s79
      %p93 = scmp.eq.s32.totalorder %s19, 2
      %p94 = por %p92, %p93
      %p96 = scmp.ne.s32.totalorder %s79, %s95
      %p97 = scmp.eq.s32.totalorder %s19, 0
      %p98 = por %p96, %p97
      %s99 = ssub.s32 %s13, %s20
      %p100 = scmp.eq.s32.totalorder %s99, 0
      %s102 = sadd.s32 %s101, 1
      %s103 = scalar_select %p100, %s101, %s102
      %p106 = pneg %p100
      %p107 = scmp.eq.s32.totalorder %s13, 2
      %p108 = por %p106, %p107
      %p109 = scmp.ne.s32.totalorder %s101, %s104
      %p110 = scmp.eq.s32.totalorder %s13, 0
      %p111 = por %p109, %p110
      %p112 = scmp.ne.s32.totalorder %s101, %s104
      %p113 = scmp.eq.s32.totalorder %s18, 2
      %p114 = por %p112, %p113
      %p115 = scmp.ne.s32.totalorder %s104, %s105
      %p116 = scmp.eq.s32.totalorder %s18, 0
      %p117 = por %p115, %p116
      %p118 = scmp.ne.s32.totalorder %s104, %s105
      %p119 = scmp.eq.s32.totalorder %s19, 2
      %p120 = por %p118, %p119
      %p122 = scmp.ne.s32.totalorder %s105, %s121
      %p123 = scmp.eq.s32.totalorder %s19, 0
      %p124 = por %p122, %p123
      %s125 = ssub.s32 %s13, %s20
      %p126 = scmp.eq.s32.totalorder %s125, 0
      %s128 = sadd.s32 %s127, 1
      %s129 = scalar_select %p126, %s127, %s128
      %p132 = pneg %p126
      %p133 = scmp.eq.s32.totalorder %s13, 2
      %p134 = por %p132, %p133
      %p135 = scmp.ne.s32.totalorder %s127, %s130
      %p136 = scmp.eq.s32.totalorder %s13, 0
      %p137 = por %p135, %p136
      %p138 = scmp.ne.s32.totalorder %s127, %s130
      %p139 = scmp.eq.s32.totalorder %s18, 2
      %p140 = por %p138, %p139
      %p141 = scmp.ne.s32.totalorder %s130, %s131
      %p142 = scmp.eq.s32.totalorder %s18, 0
      %p143 = por %p141, %p142
      %p144 = scmp.ne.s32.totalorder %s130, %s131
      %p145 = scmp.eq.s32.totalorder %s19, 2
      %p146 = por %p144, %p145
      %p148 = scmp.ne.s32.totalorder %s131, %s147
      %p149 = scmp.eq.s32.totalorder %s19, 0
      %p150 = por %p148, %p149
      %p151 = scmp.le.s32.totalorder 1, %s13
      %p152 = scmp.lt.s32.totalorder %s13, 4
      %p153 = pnand %p151, %p152
      %p154 = pneg %p153
      // Predicated region
      $region9: #{tpu_custom_call.1} parent=5 // pred_check
        _
      $region10: #{tpu_custom_call.1} parent=5 // pred_check_branch
        %156 = sbr.rel (%p153) target = $region12
      $region11: #{tpu_custom_call.1} parent=5 // pred_region
        %s157 = ssub.s32 %s13, 1
      $region12: #{tpu_custom_call.1} parent=5 // pred_fallthru
        _
      %p158 = scmp.lt.s32.totalorder %s13, 3
      // Predicated region
      $region13: #{tpu_custom_call.1} parent=5 // pred_check
        %p159 = pneg %p158
      $region14: #{tpu_custom_call.1} parent=5 // pred_check_branch
        %161 = sbr.rel (%p159) target = $region16
      $region15: #{tpu_custom_call.1} parent=5 // pred_region
        // Predicated region
        $region17: #{tpu_custom_call.1} parent=15 // pred_check
          %p162 = pneg %p33
        $region18: #{tpu_custom_call.1} parent=15 // pred_check_branch
          %164 = sbr.rel (%p162) target = $region20
        $region19: #{tpu_custom_call.1} parent=15 // pred_region
          %s165 = smul.u32 16, %s13
          %s166 = ssub.s32 38, %s165
          %p167 = scmp.lt.s32.totalorder %s166, 16
          %s168 = scalar_select %p167, %s166, 16
          %s169 = smul.u32 128, %s168
          %p170 = scmp.lt.s32.totalorder %s165, 37
          %s171 = scalar_select %p170, %s165, 37
          %s172 = smul.addr %s171, 8
          %s173 = scalar_lea.vmem %s0, %s172
          %s174 = smul.u32 16, %s13
          %s175 = ssub.s32 38, %s174
          %p176 = scmp.lt.s32.totalorder %s175, 16
          %s177 = scalar_select %p176, %s175, 16
          %s178 = smul.u32 128, %s177
        $region20: #{tpu_custom_call.1} parent=15 // pred_fallthru
          _
        // Predicated region
        $region21: #{tpu_custom_call.1} parent=15 // pred_check
          %p179 = pneg %p59
        $region22: #{tpu_custom_call.1} parent=15 // pred_check_branch
          %181 = sbr.rel (%p179) target = $region24
        $region23: #{tpu_custom_call.1} parent=15 // pred_region
          %s182 = smul.u32 16, %s13
          %s183 = ssub.s32 38, %s182
          %p184 = scmp.lt.s32.totalorder %s183, 16
          %s185 = scalar_select %p184, %s183, 16
          %s186 = smul.u32 128, %s185
          %p187 = scmp.lt.s32.totalorder %s182, 37
          %s188 = scalar_select %p187, %s182, 37
          %s189 = smul.addr %s188, 8
          %s190 = scalar_lea.vmem %s1, %s189
          %s191 = smul.u32 16, %s13
          %s192 = ssub.s32 38, %s191
          %p193 = scmp.lt.s32.totalorder %s192, 16
          %s194 = scalar_select %p193, %s192, 16
          %s195 = smul.u32 128, %s194
        $region24: #{tpu_custom_call.1} parent=15 // pred_fallthru
          _
        // Predicated region
        $region25: #{tpu_custom_call.1} parent=15 // pred_check
          %p196 = pneg %p85
        $region26: #{tpu_custom_call.1} parent=15 // pred_check_branch
          %198 = sbr.rel (%p196) target = $region28
        $region27: #{tpu_custom_call.1} parent=15 // pred_region
          %s199 = smul.u32 16, %s13
          %s200 = ssub.s32 38, %s199
          %p201 = scmp.lt.s32.totalorder %s200, 16
          %s202 = scalar_select %p201, %s200, 16
          %s203 = smul.u32 128, %s202
          %p204 = scmp.lt.s32.totalorder %s199, 37
          %s205 = scalar_select %p204, %s199, 37
          %s206 = smul.addr %s205, 8
          %s207 = scalar_lea.vmem %s2, %s206
          %s208 = smul.u32 16, %s13
          %s209 = ssub.s32 38, %s208
          %p210 = scmp.lt.s32.totalorder %s209, 16
          %s211 = scalar_select %p210, %s209, 16
          %s212 = smul.u32 128, %s211
        $region28: #{tpu_custom_call.1} parent=15 // pred_fallthru
          _
        // Predicated region
        $region29: #{tpu_custom_call.1} parent=15 // pred_check
          %p213 = pneg %p111
        $region30: #{tpu_custom_call.1} parent=15 // pred_check_branch
          %215 = sbr.rel (%p213) target = $region32
        $region31: #{tpu_custom_call.1} parent=15 // pred_region
          %s216 = smul.u32 16, %s13
          %s217 = ssub.s32 38, %s216
          %p218 = scmp.lt.s32.totalorder %s217, 16
          %s219 = scalar_select %p218, %s217, 16
          %s220 = smul.u32 128, %s219
          %p221 = scmp.lt.s32.totalorder %s216, 37
          %s222 = scalar_select %p221, %s216, 37
          %s223 = smul.addr %s222, 8
          %s224 = scalar_lea.vmem %s3, %s223
          %s225 = smul.u32 16, %s13
          %s226 = ssub.s32 38, %s225
          %p227 = scmp.lt.s32.totalorder %s226, 16
          %s228 = scalar_select %p227, %s226, 16
          %s229 = smul.u32 128, %s228
        $region32: #{tpu_custom_call.1} parent=15 // pred_fallthru
          _
      $region16: #{tpu_custom_call.1} parent=5 // pred_fallthru
        _
      %p230 = scmp.le.s32.totalorder 1, %s13
      %p231 = scmp.lt.s32.totalorder %s13, 4
      %p232 = pnand %p230, %p231
      %p233 = pneg %p232
      // Predicated region
      $region33: #{tpu_custom_call.1} parent=5 // pred_check
        _
      $region34: #{tpu_custom_call.1} parent=5 // pred_check_branch
        %235 = sbr.rel (%p232) target = $region36
      $region35: #{tpu_custom_call.1} parent=5 // pred_region
        %s236 = ssub.s32 %s13, 1
        %s237 = smul.u32 16, %s18
        %s238 = ssub.s32 38, %s237
        %p239 = scmp.lt.s32.totalorder %s238, 16
        %s240 = scalar_select %p239, %s238, 16
        %s241 = smul.u32 128, %s240
        %p242 = scmp.lt.s32.totalorder %s237, 37
        %s243 = scalar_select %p242, %s237, 37
        %s244 = smul.addr %s243, 8
        %s245 = scalar_lea.vmem %s0, %s244
        %p246 = pneg %p39
        %p247 = pneg %p36
        %s248 = smul.u32 16, %s18
        %s249 = ssub.s32 38, %s248
        %p250 = scmp.lt.s32.totalorder %s249, 16
        %s251 = scalar_select %p250, %s249, 16
        %s252 = smul.u32 128, %s251
        %p253 = scmp.lt.s32.totalorder %s248, 37
        %s254 = scalar_select %p253, %s248, 37
        %s255 = smul.addr %s254, 8
        %s256 = scalar_lea.vmem %s1, %s255
        %p257 = pneg %p65
        %p258 = pneg %p62
        %s259 = smul.u32 16, %s18
        %s260 = ssub.s32 38, %s259
        %p261 = scmp.lt.s32.totalorder %s260, 16
        %s262 = scalar_select %p261, %s260, 16
        %s263 = smul.u32 128, %s262
        %p264 = scmp.lt.s32.totalorder %s259, 37
        %s265 = scalar_select %p264, %s259, 37
        %s266 = smul.addr %s265, 8
        %s267 = scalar_lea.vmem %s2, %s266
        %p268 = pneg %p91
        %p269 = pneg %p88
        %s270 = smul.u32 16, %s18
        %s271 = ssub.s32 38, %s270
        %p272 = scmp.lt.s32.totalorder %s271, 16
        %s273 = scalar_select %p272, %s271, 16
        %s274 = smul.u32 128, %s273
        %p275 = scmp.lt.s32.totalorder %s270, 37
        %s276 = scalar_select %p275, %s270, 37
        %s277 = smul.addr %s276, 8
        %s278 = scalar_lea.vmem %s3, %s277
        %p279 = pneg %p117
        %p280 = pneg %p114
        %p281 = pneg %p143
        %p282 = pneg %p140
        %s283 = sand.u32 %s130, 1
        %s284 = scalar_lea.sflag [#allocation3], %s283
        %s285 = sand.u32 %s130, 1
        %s286 = scalar_lea.vmem [#allocation2], %s285
        %s287 = smul.u32 16, %s18
        %s288 = ssub.s32 38, %s287
        %p289 = scmp.lt.s32.totalorder %s288, 16
        %s290 = scalar_select %p289, %s288, 16
        %s291 = smul.u32 128, %s290
        %p292 = scmp.lt.s32.totalorder %s287, 37
        %s293 = scalar_select %p292, %s287, 37
        %s294 = smul.addr %s293, 8
        %s295 = scalar_lea.vmem %s0, %s294
        %s296 = smul.u32 16, %s18
        %s297 = ssub.s32 38, %s296
        %p298 = scmp.lt.s32.totalorder %s297, 16
        %s299 = scalar_select %p298, %s297, 16
        %s300 = smul.u32 128, %s299
        %s301 = smul.u32 16, %s18
        %s302 = ssub.s32 38, %s301
        %p303 = scmp.lt.s32.totalorder %s302, 16
        %s304 = scalar_select %p303, %s302, 16
        %s305 = smul.u32 128, %s304
        %p306 = scmp.lt.s32.totalorder %s301, 37
        %s307 = scalar_select %p306, %s301, 37
        %s308 = smul.addr %s307, 8
        %s309 = scalar_lea.vmem %s1, %s308
        %s310 = smul.u32 16, %s18
        %s311 = ssub.s32 38, %s310
        %p312 = scmp.lt.s32.totalorder %s311, 16
        %s313 = scalar_select %p312, %s311, 16
        %s314 = smul.u32 128, %s313
        %s315 = smul.u32 16, %s18
        %s316 = ssub.s32 38, %s315
        %p317 = scmp.lt.s32.totalorder %s316, 16
        %s318 = scalar_select %p317, %s316, 16
        %s319 = smul.u32 128, %s318
        %p320 = scmp.lt.s32.totalorder %s315, 37
        %s321 = scalar_select %p320, %s315, 37
        %s322 = smul.addr %s321, 8
        %s323 = scalar_lea.vmem %s2, %s322
        %s324 = smul.u32 16, %s18
        %s325 = ssub.s32 38, %s324
        %p326 = scmp.lt.s32.totalorder %s325, 16
        %s327 = scalar_select %p326, %s325, 16
        %s328 = smul.u32 128, %s327
        %s329 = smul.u32 16, %s18
        %s330 = ssub.s32 38, %s329
        %p331 = scmp.lt.s32.totalorder %s330, 16
        %s332 = scalar_select %p331, %s330, 16
        %s333 = smul.u32 128, %s332
        %p334 = scmp.lt.s32.totalorder %s329, 37
        %s335 = scalar_select %p334, %s329, 37
        %s336 = smul.addr %s335, 8
        %s337 = scalar_lea.vmem %s3, %s336
        %s338 = smul.u32 16, %s18
        %s339 = ssub.s32 38, %s338
        %p340 = scmp.lt.s32.totalorder %s339, 16
        %s341 = scalar_select %p340, %s339, 16
        %s342 = smul.u32 128, %s341
        %v343 = vld [vmem:[%s295] sm:$0xff]
        %v344 = vld [vmem:[%s295 + $0x8] sm:$0xff]
        %v345 = vld [vmem:[%s295 + $0x10] sm:$0xff]
        %v346 = vld [vmem:[%s295 + $0x18] sm:$0xff]
        %v347 = vld [vmem:[%s295 + $0x20] sm:$0xff]
        %v348 = vld [vmem:[%s295 + $0x28] sm:$0xff]
        %v349 = vld [vmem:[%s295 + $0x30] sm:$0xff]
        %v350 = vld [vmem:[%s295 + $0x38] sm:$0xff]
        %v351 = vld [vmem:[%s295 + $0x40] sm:$0xff]
        %v352 = vld [vmem:[%s295 + $0x48] sm:$0xff]
        %v353 = vld [vmem:[%s295 + $0x50] sm:$0xff]
        %v354 = vld [vmem:[%s295 + $0x58] sm:$0xff]
        %v355 = vld [vmem:[%s295 + $0x60] sm:$0xff]
        %v356 = vld [vmem:[%s295 + $0x68] sm:$0xff]
        %v357 = vld [vmem:[%s295 + $0x70] sm:$0xff]
        %v358 = vld [vmem:[%s295 + $0x78] sm:$0xff]
        %v359 = vld [vmem:[%s309] sm:$0xff]
        %v360 = vld [vmem:[%s309 + $0x8] sm:$0xff]
        %v361 = vld [vmem:[%s309 + $0x10] sm:$0xff]
        %v362 = vld [vmem:[%s309 + $0x18] sm:$0xff]
        %v363 = vld [vmem:[%s309 + $0x20] sm:$0xff]
        %v364 = vld [vmem:[%s309 + $0x28] sm:$0xff]
        %v365 = vld [vmem:[%s309 + $0x30] sm:$0xff]
        %v366 = vld [vmem:[%s309 + $0x38] sm:$0xff]
        %v367 = vld [vmem:[%s309 + $0x40] sm:$0xff]
        %v368 = vld [vmem:[%s309 + $0x48] sm:$0xff]
        %v369 = vld [vmem:[%s309 + $0x50] sm:$0xff]
        %v370 = vld [vmem:[%s309 + $0x58] sm:$0xff]
        %v371 = vld [vmem:[%s309 + $0x60] sm:$0xff]
        %v372 = vld [vmem:[%s309 + $0x68] sm:$0xff]
        %v373 = vld [vmem:[%s309 + $0x70] sm:$0xff]
        %v374 = vld [vmem:[%s309 + $0x78] sm:$0xff]
        %375 = vmax.xlane.f32.xlu0 %v343
        %v376 = vpop.xlane.xlu0 %375
        %377 = vmax.xlane.f32.xlu0 %v344
        %v378 = vpop.xlane.xlu0 %377
        %379 = vmax.xlane.f32.xlu0 %v345
        %v380 = vpop.xlane.xlu0 %379
        %381 = vmax.xlane.f32.xlu0 %v346
        %v382 = vpop.xlane.xlu0 %381
        %383 = vmax.xlane.f32.xlu0 %v347
        %v384 = vpop.xlane.xlu0 %383
        %385 = vmax.xlane.f32.xlu0 %v348
        %v386 = vpop.xlane.xlu0 %385
        %387 = vmax.xlane.f32.xlu0 %v349
        %v388 = vpop.xlane.xlu0 %387
        %389 = vmax.xlane.f32.xlu0 %v350
        %v390 = vpop.xlane.xlu0 %389
        %391 = vmax.xlane.f32.xlu0 %v351
        %v392 = vpop.xlane.xlu0 %391
        %393 = vmax.xlane.f32.xlu0 %v352
        %v394 = vpop.xlane.xlu0 %393
        %395 = vmax.xlane.f32.xlu0 %v353
        %v396 = vpop.xlane.xlu0 %395
        %397 = vmax.xlane.f32.xlu0 %v354
        %v398 = vpop.xlane.xlu0 %397
        %399 = vmax.xlane.f32.xlu0 %v355
        %v400 = vpop.xlane.xlu0 %399
        %401 = vmax.xlane.f32.xlu0 %v356
        %v402 = vpop.xlane.xlu0 %401
        %403 = vmax.xlane.f32.xlu0 %v357
        %v404 = vpop.xlane.xlu0 %403
        %405 = vmax.xlane.f32.xlu0 %v358
        %v406 = vpop.xlane.xlu0 %405
        %v407 = vsub.f32 %v343, %v376
        %v408 = vsub.f32 %v344, %v378
        %v409 = vsub.f32 %v345, %v380
        %v410 = vsub.f32 %v346, %v382
        %v411 = vsub.f32 %v347, %v384
        %v412 = vsub.f32 %v348, %v386
        %v413 = vsub.f32 %v349, %v388
        %v414 = vsub.f32 %v350, %v390
        %v415 = vsub.f32 %v351, %v392
        %v416 = vsub.f32 %v352, %v394
        %v417 = vsub.f32 %v353, %v396
        %v418 = vsub.f32 %v354, %v398
        %v419 = vsub.f32 %v355, %v400
        %v420 = vsub.f32 %v356, %v402
        %v421 = vsub.f32 %v357, %v404
        %v422 = vsub.f32 %v358, %v406
        %v423 = vmul.f32 %v407, 1.442695
        %v424 = vpow.pop %v423
        %v425 = vmul.f32 %v408, 1.442695
        %v426 = vpow.pop %v425
        %v427 = vmul.f32 %v409, 1.442695
        %v428 = vpow.pop %v427
        %v429 = vmul.f32 %v410, 1.442695
        %v430 = vpow.pop %v429
        %v431 = vmul.f32 %v411, 1.442695
        %v432 = vpow.pop %v431
        %v433 = vmul.f32 %v412, 1.442695
        %v434 = vpow.pop %v433
        %v435 = vmul.f32 %v413, 1.442695
        %v436 = vpow.pop %v435
        %v437 = vmul.f32 %v414, 1.442695
        %v438 = vpow.pop %v437
        %v439 = vmul.f32 %v415, 1.442695
        %v440 = vpow.pop %v439
        %v441 = vmul.f32 %v416, 1.442695
        %v442 = vpow.pop %v441
        %v443 = vmul.f32 %v417, 1.442695
        %v444 = vpow.pop %v443
        %v445 = vmul.f32 %v418, 1.442695
        %v446 = vpow.pop %v445
        %v447 = vmul.f32 %v419, 1.442695
        %v448 = vpow.pop %v447
        %v449 = vmul.f32 %v420, 1.442695
        %v450 = vpow.pop %v449
        %v451 = vmul.f32 %v421, 1.442695
        %v452 = vpow.pop %v451
        %v453 = vmul.f32 %v422, 1.442695
        %v454 = vpow.pop %v453
        %455 = vadd.xlane.f32.xlu0 %v424
        %v456 = vpop.xlane.xlu0 %455
        %457 = vadd.xlane.f32.xlu0 %v426
        %v458 = vpop.xlane.xlu0 %457
        %459 = vadd.xlane.f32.xlu0 %v428
        %v460 = vpop.xlane.xlu0 %459
        %461 = vadd.xlane.f32.xlu0 %v430
        %v462 = vpop.xlane.xlu0 %461
        %463 = vadd.xlane.f32.xlu0 %v432
        %v464 = vpop.xlane.xlu0 %463
        %465 = vadd.xlane.f32.xlu0 %v434
        %v466 = vpop.xlane.xlu0 %465
        %467 = vadd.xlane.f32.xlu0 %v436
        %v468 = vpop.xlane.xlu0 %467
        %469 = vadd.xlane.f32.xlu0 %v438
        %v470 = vpop.xlane.xlu0 %469
        %471 = vadd.xlane.f32.xlu0 %v440
        %v472 = vpop.xlane.xlu0 %471
        %473 = vadd.xlane.f32.xlu0 %v442
        %v474 = vpop.xlane.xlu0 %473
        %475 = vadd.xlane.f32.xlu0 %v444
        %v476 = vpop.xlane.xlu0 %475
        %477 = vadd.xlane.f32.xlu0 %v446
        %v478 = vpop.xlane.xlu0 %477
        %479 = vadd.xlane.f32.xlu0 %v448
        %v480 = vpop.xlane.xlu0 %479
        %481 = vadd.xlane.f32.xlu0 %v450
        %v482 = vpop.xlane.xlu0 %481
        %483 = vadd.xlane.f32.xlu0 %v452
        %v484 = vpop.xlane.xlu0 %483
        %485 = vadd.xlane.f32.xlu0 %v454
        %v486 = vpop.xlane.xlu0 %485
        %v487 = vlog2.pop %v456
        %v488 = vmul.f32 %v487, 0.6931472
        %v489 = vlog2.pop %v458
        %v490 = vmul.f32 %v489, 0.6931472
        %v491 = vlog2.pop %v460
        %v492 = vmul.f32 %v491, 0.6931472
        %v493 = vlog2.pop %v462
        %v494 = vmul.f32 %v493, 0.6931472
        %v495 = vlog2.pop %v464
        %v496 = vmul.f32 %v495, 0.6931472
        %v497 = vlog2.pop %v466
        %v498 = vmul.f32 %v497, 0.6931472
        %v499 = vlog2.pop %v468
        %v500 = vmul.f32 %v499, 0.6931472
        %v501 = vlog2.pop %v470
        %v502 = vmul.f32 %v501, 0.6931472
        %v503 = vlog2.pop %v472
        %v504 = vmul.f32 %v503, 0.6931472
        %v505 = vlog2.pop %v474
        %v506 = vmul.f32 %v505, 0.6931472
        %v507 = vlog2.pop %v476
        %v508 = vmul.f32 %v507, 0.6931472
        %v509 = vlog2.pop %v478
        %v510 = vmul.f32 %v509, 0.6931472
        %v511 = vlog2.pop %v480
        %v512 = vmul.f32 %v511, 0.6931472
        %v513 = vlog2.pop %v482
        %v514 = vmul.f32 %v513, 0.6931472
        %v515 = vlog2.pop %v484
        %v516 = vmul.f32 %v515, 0.6931472
        %v517 = vlog2.pop %v486
        %v518 = vmul.f32 %v517, 0.6931472
        %v519 = vlaneseq
        %v520 = vand.u32 %v519, 127
        %521 = vset.pattern.permute.xlu0 0
        %522 = vperm.xlu0 %521, %v359
        %v523 = vpop.permute.xlu0 %522
        %524 = vset.pattern.permute.xlu0 0
        %525 = vperm.xlu0 %524, %v360
        %v526 = vpop.permute.xlu0 %525
        %527 = vset.pattern.permute.xlu0 0
        %528 = vperm.xlu0 %527, %v361
        %v529 = vpop.permute.xlu0 %528
        %530 = vset.pattern.permute.xlu0 0
        %531 = vperm.xlu0 %530, %v362
        %v532 = vpop.permute.xlu0 %531
        %533 = vset.pattern.permute.xlu0 0
        %534 = vperm.xlu0 %533, %v363
        %v535 = vpop.permute.xlu0 %534
        %536 = vset.pattern.permute.xlu0 0
        %537 = vperm.xlu0 %536, %v364
        %v538 = vpop.permute.xlu0 %537
        %539 = vset.pattern.permute.xlu0 0
        %540 = vperm.xlu0 %539, %v365
        %v541 = vpop.permute.xlu0 %540
        %542 = vset.pattern.permute.xlu0 0
        %543 = vperm.xlu0 %542, %v366
        %v544 = vpop.permute.xlu0 %543
        %545 = vset.pattern.permute.xlu0 0
        %546 = vperm.xlu0 %545, %v367
        %v547 = vpop.permute.xlu0 %546
        %548 = vset.pattern.permute.xlu0 0
        %549 = vperm.xlu0 %548, %v368
        %v550 = vpop.permute.xlu0 %549
        %551 = vset.pattern.permute.xlu0 0
        %552 = vperm.xlu0 %551, %v369
        %v553 = vpop.permute.xlu0 %552
        %554 = vset.pattern.permute.xlu0 0
        %555 = vperm.xlu0 %554, %v370
        %v556 = vpop.permute.xlu0 %555
        %557 = vset.pattern.permute.xlu0 0
        %558 = vperm.xlu0 %557, %v371
        %v559 = vpop.permute.xlu0 %558
        %560 = vset.pattern.permute.xlu0 0
        %561 = vperm.xlu0 %560, %v372
        %v562 = vpop.permute.xlu0 %561
        %563 = vset.pattern.permute.xlu0 0
        %564 = vperm.xlu0 %563, %v373
        %v565 = vpop.permute.xlu0 %564
        %566 = vset.pattern.permute.xlu0 0
        %567 = vperm.xlu0 %566, %v374
        %v568 = vpop.permute.xlu0 %567
        %vm569 = vcmp.eq.s32.totalorder %v520, %v523
        %vm570 = vcmp.eq.s32.totalorder %v520, %v526
        %vm571 = vcmp.eq.s32.totalorder %v520, %v529
        %vm572 = vcmp.eq.s32.totalorder %v520, %v532
        %vm573 = vcmp.eq.s32.totalorder %v520, %v535
        %vm574 = vcmp.eq.s32.totalorder %v520, %v538
        %vm575 = vcmp.eq.s32.totalorder %v520, %v541
        %vm576 = vcmp.eq.s32.totalorder %v520, %v544
        %vm577 = vcmp.eq.s32.totalorder %v520, %v547
        %vm578 = vcmp.eq.s32.totalorder %v520, %v550
        %vm579 = vcmp.eq.s32.totalorder %v520, %v553
        %vm580 = vcmp.eq.s32.totalorder %v520, %v556
        %vm581 = vcmp.eq.s32.totalorder %v520, %v559
        %vm582 = vcmp.eq.s32.totalorder %v520, %v562
        %vm583 = vcmp.eq.s32.totalorder %v520, %v565
        %vm584 = vcmp.eq.s32.totalorder %v520, %v568
        %v585 = vsel %vm569, %v407, 0.0
        %v586 = vsel %vm570, %v408, 0.0
        %v587 = vsel %vm571, %v409, 0.0
        %v588 = vsel %vm572, %v410, 0.0
        %v589 = vsel %vm573, %v411, 0.0
        %v590 = vsel %vm574, %v412, 0.0
        %v591 = vsel %vm575, %v413, 0.0
        %v592 = vsel %vm576, %v414, 0.0
        %v593 = vsel %vm577, %v415, 0.0
        %v594 = vsel %vm578, %v416, 0.0
        %v595 = vsel %vm579, %v417, 0.0
        %v596 = vsel %vm580, %v418, 0.0
        %v597 = vsel %vm581, %v419, 0.0
        %v598 = vsel %vm582, %v420, 0.0
        %v599 = vsel %vm583, %v421, 0.0
        %v600 = vsel %vm584, %v422, 0.0
        %601 = vadd.xlane.f32.xlu0 %v585
        %v602 = vpop.xlane.xlu0 %601
        %603 = vadd.xlane.f32.xlu0 %v586
        %v604 = vpop.xlane.xlu0 %603
        %605 = vadd.xlane.f32.xlu0 %v587
        %v606 = vpop.xlane.xlu0 %605
        %607 = vadd.xlane.f32.xlu0 %v588
        %v608 = vpop.xlane.xlu0 %607
        %609 = vadd.xlane.f32.xlu0 %v589
        %v610 = vpop.xlane.xlu0 %609
        %611 = vadd.xlane.f32.xlu0 %v590
        %v612 = vpop.xlane.xlu0 %611
        %613 = vadd.xlane.f32.xlu0 %v591
        %v614 = vpop.xlane.xlu0 %613
        %615 = vadd.xlane.f32.xlu0 %v592
        %v616 = vpop.xlane.xlu0 %615
        %617 = vadd.xlane.f32.xlu0 %v593
        %v618 = vpop.xlane.xlu0 %617
        %619 = vadd.xlane.f32.xlu0 %v594
        %v620 = vpop.xlane.xlu0 %619
        %621 = vadd.xlane.f32.xlu0 %v595
        %v622 = vpop.xlane.xlu0 %621
        %623 = vadd.xlane.f32.xlu0 %v596
        %v624 = vpop.xlane.xlu0 %623
        %625 = vadd.xlane.f32.xlu0 %v597
        %v626 = vpop.xlane.xlu0 %625
        %627 = vadd.xlane.f32.xlu0 %v598
        %v628 = vpop.xlane.xlu0 %627
        %629 = vadd.xlane.f32.xlu0 %v599
        %v630 = vpop.xlane.xlu0 %629
        %631 = vadd.xlane.f32.xlu0 %v600
        %v632 = vpop.xlane.xlu0 %631
        %v633 = vsub.f32 %v488, %v602
        %v634 = vsub.f32 %v490, %v604
        %v635 = vsub.f32 %v492, %v606
        %v636 = vsub.f32 %v494, %v608
        %v637 = vsub.f32 %v496, %v610
        %v638 = vsub.f32 %v498, %v612
        %v639 = vsub.f32 %v500, %v614
        %v640 = vsub.f32 %v502, %v616
        %v641 = vsub.f32 %v504, %v618
        %v642 = vsub.f32 %v506, %v620
        %v643 = vsub.f32 %v508, %v622
        %v644 = vsub.f32 %v510, %v624
        %v645 = vsub.f32 %v512, %v626
        %v646 = vsub.f32 %v514, %v628
        %v647 = vsub.f32 %v516, %v630
        %v648 = vsub.f32 %v518, %v632
        %v649 = vld [vmem:[%s323] sm:$0xff]
        %v650 = vld [vmem:[%s323 + $0x8] sm:$0xff]
        %v651 = vld [vmem:[%s323 + $0x10] sm:$0xff]
        %v652 = vld [vmem:[%s323 + $0x18] sm:$0xff]
        %v653 = vld [vmem:[%s323 + $0x20] sm:$0xff]
        %v654 = vld [vmem:[%s323 + $0x28] sm:$0xff]
        %v655 = vld [vmem:[%s323 + $0x30] sm:$0xff]
        %v656 = vld [vmem:[%s323 + $0x38] sm:$0xff]
        %v657 = vld [vmem:[%s323 + $0x40] sm:$0xff]
        %v658 = vld [vmem:[%s323 + $0x48] sm:$0xff]
        %v659 = vld [vmem:[%s323 + $0x50] sm:$0xff]
        %v660 = vld [vmem:[%s323 + $0x58] sm:$0xff]
        %v661 = vld [vmem:[%s323 + $0x60] sm:$0xff]
        %v662 = vld [vmem:[%s323 + $0x68] sm:$0xff]
        %v663 = vld [vmem:[%s323 + $0x70] sm:$0xff]
        %v664 = vld [vmem:[%s323 + $0x78] sm:$0xff]
        %v665 = vld [vmem:[%s337] sm:$0xff]
        %v666 = vld [vmem:[%s337 + $0x8] sm:$0xff]
        %v667 = vld [vmem:[%s337 + $0x10] sm:$0xff]
        %v668 = vld [vmem:[%s337 + $0x18] sm:$0xff]
        %v669 = vld [vmem:[%s337 + $0x20] sm:$0xff]
        %v670 = vld [vmem:[%s337 + $0x28] sm:$0xff]
        %v671 = vld [vmem:[%s337 + $0x30] sm:$0xff]
        %v672 = vld [vmem:[%s337 + $0x38] sm:$0xff]
        %v673 = vld [vmem:[%s337 + $0x40] sm:$0xff]
        %v674 = vld [vmem:[%s337 + $0x48] sm:$0xff]
        %v675 = vld [vmem:[%s337 + $0x50] sm:$0xff]
        %v676 = vld [vmem:[%s337 + $0x58] sm:$0xff]
        %v677 = vld [vmem:[%s337 + $0x60] sm:$0xff]
        %v678 = vld [vmem:[%s337 + $0x68] sm:$0xff]
        %v679 = vld [vmem:[%s337 + $0x70] sm:$0xff]
        %v680 = vld [vmem:[%s337 + $0x78] sm:$0xff]
        %v681 = vsub.f32 0.0, %v633
        %v682 = vsub.f32 0.0, %v634
        %v683 = vsub.f32 0.0, %v635
        %v684 = vsub.f32 0.0, %v636
        %v685 = vsub.f32 0.0, %v637
        %v686 = vsub.f32 0.0, %v638
        %v687 = vsub.f32 0.0, %v639
        %v688 = vsub.f32 0.0, %v640
        %v689 = vsub.f32 0.0, %v641
        %v690 = vsub.f32 0.0, %v642
        %v691 = vsub.f32 0.0, %v643
        %v692 = vsub.f32 0.0, %v644
        %v693 = vsub.f32 0.0, %v645
        %v694 = vsub.f32 0.0, %v646
        %v695 = vsub.f32 0.0, %v647
        %v696 = vsub.f32 0.0, %v648
        %v697 = vmul.f32 %v681, 1.442695
        %v698 = vpow.pop %v697
        %v699 = vmul.f32 %v682, 1.442695
        %v700 = vpow.pop %v699
        %v701 = vmul.f32 %v683, 1.442695
        %v702 = vpow.pop %v701
        %v703 = vmul.f32 %v684, 1.442695
        %v704 = vpow.pop %v703
        %v705 = vmul.f32 %v685, 1.442695
        %v706 = vpow.pop %v705
        %v707 = vmul.f32 %v686, 1.442695
        %v708 = vpow.pop %v707
        %v709 = vmul.f32 %v687, 1.442695
        %v710 = vpow.pop %v709
        %v711 = vmul.f32 %v688, 1.442695
        %v712 = vpow.pop %v711
        %v713 = vmul.f32 %v689, 1.442695
        %v714 = vpow.pop %v713
        %v715 = vmul.f32 %v690, 1.442695
        %v716 = vpow.pop %v715
        %v717 = vmul.f32 %v691, 1.442695
        %v718 = vpow.pop %v717
        %v719 = vmul.f32 %v692, 1.442695
        %v720 = vpow.pop %v719
        %v721 = vmul.f32 %v693, 1.442695
        %v722 = vpow.pop %v721
        %v723 = vmul.f32 %v694, 1.442695
        %v724 = vpow.pop %v723
        %v725 = vmul.f32 %v695, 1.442695
        %v726 = vpow.pop %v725
        %v727 = vmul.f32 %v696, 1.442695
        %v728 = vpow.pop %v727
        %v729 = vsub.f32 1.0, %v698
        %v730 = vsub.f32 1.0, %v700
        %v731 = vsub.f32 1.0, %v702
        %v732 = vsub.f32 1.0, %v704
        %v733 = vsub.f32 1.0, %v706
        %v734 = vsub.f32 1.0, %v708
        %v735 = vsub.f32 1.0, %v710
        %v736 = vsub.f32 1.0, %v712
        %v737 = vsub.f32 1.0, %v714
        %v738 = vsub.f32 1.0, %v716
        %v739 = vsub.f32 1.0, %v718
        %v740 = vsub.f32 1.0, %v720
        %v741 = vsub.f32 1.0, %v722
        %v742 = vsub.f32 1.0, %v724
        %v743 = vsub.f32 1.0, %v726
        %v744 = vsub.f32 1.0, %v728
        %v745 = vmul.f32 %v729, 2.0
        %v746 = vmul.f32 %v730, 2.0
        %v747 = vmul.f32 %v731, 2.0
        %v748 = vmul.f32 %v732, 2.0
        %v749 = vmul.f32 %v733, 2.0
        %v750 = vmul.f32 %v734, 2.0
        %v751 = vmul.f32 %v735, 2.0
        %v752 = vmul.f32 %v736, 2.0
        %v753 = vmul.f32 %v737, 2.0
        %v754 = vmul.f32 %v738, 2.0
        %v755 = vmul.f32 %v739, 2.0
        %v756 = vmul.f32 %v740, 2.0
        %v757 = vmul.f32 %v741, 2.0
        %v758 = vmul.f32 %v742, 2.0
        %v759 = vmul.f32 %v743, 2.0
        %v760 = vmul.f32 %v744, 2.0
        %v761 = vmul.f32 %v745, %v649
        %v762 = vmul.f32 %v746, %v650
        %v763 = vmul.f32 %v747, %v651
        %v764 = vmul.f32 %v748, %v652
        %v765 = vmul.f32 %v749, %v653
        %v766 = vmul.f32 %v750, %v654
        %v767 = vmul.f32 %v751, %v655
        %v768 = vmul.f32 %v752, %v656
        %v769 = vmul.f32 %v753, %v657
        %v770 = vmul.f32 %v754, %v658
        %v771 = vmul.f32 %v755, %v659
        %v772 = vmul.f32 %v756, %v660
        %v773 = vmul.f32 %v757, %v661
        %v774 = vmul.f32 %v758, %v662
        %v775 = vmul.f32 %v759, %v663
        %v776 = vmul.f32 %v760, %v664
        %v777 = vadd.f32 %v761, 0.001
        %v778 = vadd.f32 %v762, 0.001
        %v779 = vadd.f32 %v763, 0.001
        %v780 = vadd.f32 %v764, 0.001
        %v781 = vadd.f32 %v765, 0.001
        %v782 = vadd.f32 %v766, 0.001
        %v783 = vadd.f32 %v767, 0.001
        %v784 = vadd.f32 %v768, 0.001
        %v785 = vadd.f32 %v769, 0.001
        %v786 = vadd.f32 %v770, 0.001
        %v787 = vadd.f32 %v771, 0.001
        %v788 = vadd.f32 %v772, 0.001
        %v789 = vadd.f32 %v773, 0.001
        %v790 = vadd.f32 %v774, 0.001
        %v791 = vadd.f32 %v775, 0.001
        %v792 = vadd.f32 %v776, 0.001
        %v793 = vrcp.pop %v777
        %v794 = vmul.f32 10000.0, %v793
        %v795 = vrcp.pop %v778
        %v796 = vmul.f32 10000.0, %v795
        %v797 = vrcp.pop %v779
        %v798 = vmul.f32 10000.0, %v797
        %v799 = vrcp.pop %v780
        %v800 = vmul.f32 10000.0, %v799
        %v801 = vrcp.pop %v781
        %v802 = vmul.f32 10000.0, %v801
        %v803 = vrcp.pop %v782
        %v804 = vmul.f32 10000.0, %v803
        %v805 = vrcp.pop %v783
        %v806 = vmul.f32 10000.0, %v805
        %v807 = vrcp.pop %v784
        %v808 = vmul.f32 10000.0, %v807
        %v809 = vrcp.pop %v785
        %v810 = vmul.f32 10000.0, %v809
        %v811 = vrcp.pop %v786
        %v812 = vmul.f32 10000.0, %v811
        %v813 = vrcp.pop %v787
        %v814 = vmul.f32 10000.0, %v813
        %v815 = vrcp.pop %v788
        %v816 = vmul.f32 10000.0, %v815
        %v817 = vrcp.pop %v789
        %v818 = vmul.f32 10000.0, %v817
        %v819 = vrcp.pop %v790
        %v820 = vmul.f32 10000.0, %v819
        %v821 = vrcp.pop %v791
        %v822 = vmul.f32 10000.0, %v821
        %v823 = vrcp.pop %v792
        %v824 = vmul.f32 10000.0, %v823
        %v825 = vmul.f32 %v633, %v665
        %v826 = vmul.f32 %v634, %v666
        %v827 = vmul.f32 %v635, %v667
        %v828 = vmul.f32 %v636, %v668
        %v829 = vmul.f32 %v637, %v669
        %v830 = vmul.f32 %v638, %v670
        %v831 = vmul.f32 %v639, %v671
        %v832 = vmul.f32 %v640, %v672
        %v833 = vmul.f32 %v641, %v673
        %v834 = vmul.f32 %v642, %v674
        %v835 = vmul.f32 %v643, %v675
        %v836 = vmul.f32 %v644, %v676
        %v837 = vmul.f32 %v645, %v677
        %v838 = vmul.f32 %v646, %v678
        %v839 = vmul.f32 %v647, %v679
        %v840 = vmul.f32 %v648, %v680
        %v841 = vmul.f32 %v825, %v794
        %v842 = vmul.f32 %v826, %v796
        %v843 = vmul.f32 %v827, %v798
        %v844 = vmul.f32 %v828, %v800
        %v845 = vmul.f32 %v829, %v802
        %v846 = vmul.f32 %v830, %v804
        %v847 = vmul.f32 %v831, %v806
        %v848 = vmul.f32 %v832, %v808
        %v849 = vmul.f32 %v833, %v810
        %v850 = vmul.f32 %v834, %v812
        %v851 = vmul.f32 %v835, %v814
        %v852 = vmul.f32 %v836, %v816
        %v853 = vmul.f32 %v837, %v818
        %v854 = vmul.f32 %v838, %v820
        %v855 = vmul.f32 %v839, %v822
        %v856 = vmul.f32 %v840, %v824
        %s857 = smul.u32 %s18, 128
        %v858 = vlaneseq
        %v859 = vshrl.u32 %v858, 7
        %v860 = vadd.s32 %v859, 8
        %v861 = vadd.s32 %v859, 16
        %v862 = vadd.s32 %v859, 24
        %v863 = vadd.s32 %v859, 32
        %v864 = vadd.s32 %v859, 40
        %v865 = vadd.s32 %v859, 48
        %v866 = vadd.s32 %v859, 56
        %v867 = vadd.s32 %v859, 64
        %v868 = vadd.s32 %v859, 72
        %v869 = vadd.s32 %v859, 80
        %v870 = vadd.s32 %v859, 88
        %v871 = vadd.s32 %v859, 96
        %v872 = vadd.s32 %v859, 104
        %v873 = vadd.s32 %v859, 112
        %v874 = vadd.s32 %v859, 120
        %v875 = vstv %s857
        %v876 = vadd.s32 %v875, %v859
        %v877 = vadd.s32 %v875, %v860
        %v878 = vadd.s32 %v875, %v861
        %v879 = vadd.s32 %v875, %v862
        %v880 = vadd.s32 %v875, %v863
        %v881 = vadd.s32 %v875, %v864
        %v882 = vadd.s32 %v875, %v865
        %v883 = vadd.s32 %v875, %v866
        %v884 = vadd.s32 %v875, %v867
        %v885 = vadd.s32 %v875, %v868
        %v886 = vadd.s32 %v875, %v869
        %v887 = vadd.s32 %v875, %v870
        %v888 = vadd.s32 %v875, %v871
        %v889 = vadd.s32 %v875, %v872
        %v890 = vadd.s32 %v875, %v873
        %v891 = vadd.s32 %v875, %v874
        %vm892 = vcmp.lt.s32.totalorder %v876, 300
        %vm893 = vcmp.lt.s32.totalorder %v877, 300
        %vm894 = vcmp.lt.s32.totalorder %v878, 300
        %vm895 = vcmp.lt.s32.totalorder %v879, 300
        %vm896 = vcmp.lt.s32.totalorder %v880, 300
        %vm897 = vcmp.lt.s32.totalorder %v881, 300
        %vm898 = vcmp.lt.s32.totalorder %v882, 300
        %vm899 = vcmp.lt.s32.totalorder %v883, 300
        %vm900 = vcmp.lt.s32.totalorder %v884, 300
        %vm901 = vcmp.lt.s32.totalorder %v885, 300
        %vm902 = vcmp.lt.s32.totalorder %v886, 300
        %vm903 = vcmp.lt.s32.totalorder %v887, 300
        %vm904 = vcmp.lt.s32.totalorder %v888, 300
        %vm905 = vcmp.lt.s32.totalorder %v889, 300
        %vm906 = vcmp.lt.s32.totalorder %v890, 300
        %vm907 = vcmp.lt.s32.totalorder %v891, 300
        %v908 = vsel %vm892, %v841, 0.0
        %v909 = vsel %vm893, %v842, 0.0
        %v910 = vsel %vm894, %v843, 0.0
        %v911 = vsel %vm895, %v844, 0.0
        %v912 = vsel %vm896, %v845, 0.0
        %v913 = vsel %vm897, %v846, 0.0
        %v914 = vsel %vm898, %v847, 0.0
        %v915 = vsel %vm899, %v848, 0.0
        %v916 = vsel %vm900, %v849, 0.0
        %v917 = vsel %vm901, %v850, 0.0
        %v918 = vsel %vm902, %v851, 0.0
        %v919 = vsel %vm903, %v852, 0.0
        %v920 = vsel %vm904, %v853, 0.0
        %v921 = vsel %vm905, %v854, 0.0
        %v922 = vsel %vm906, %v855, 0.0
        %v923 = vsel %vm907, %v856, 0.0
        %vm924 = vcmask 7168
        %v925 = vsel %vm924, %v908, 0.0
        %v926 = vsel %vm924, %v909, 0.0
        %v927 = vadd.f32 %v925, %v926
        %v928 = vsel %vm924, %v910, 0.0
        %v929 = vadd.f32 %v927, %v928
        %v930 = vsel %vm924, %v911, 0.0
        %v931 = vadd.f32 %v929, %v930
        %v932 = vsel %vm924, %v912, 0.0
        %v933 = vadd.f32 %v931, %v932
        %v934 = vsel %vm924, %v913, 0.0
        %v935 = vadd.f32 %v933, %v934
        %v936 = vsel %vm924, %v914, 0.0
        %v937 = vadd.f32 %v935, %v936
        %v938 = vsel %vm924, %v915, 0.0
        %v939 = vadd.f32 %v937, %v938
        %v940 = vsel %vm924, %v916, 0.0
        %v941 = vadd.f32 %v939, %v940
        %v942 = vsel %vm924, %v917, 0.0
        %v943 = vadd.f32 %v941, %v942
        %v944 = vsel %vm924, %v918, 0.0
        %v945 = vadd.f32 %v943, %v944
        %v946 = vsel %vm924, %v919, 0.0
        %v947 = vadd.f32 %v945, %v946
        %v948 = vsel %vm924, %v920, 0.0
        %v949 = vadd.f32 %v947, %v948
        %v950 = vsel %vm924, %v921, 0.0
        %v951 = vadd.f32 %v949, %v950
        %v952 = vsel %vm924, %v922, 0.0
        %v953 = vadd.f32 %v951, %v952
        %v954 = vsel %vm924, %v923, 0.0
        %v955 = vadd.f32 %v953, %v954
        %956 = vadd.xlane.f32.xlu0 %v955
        %v957 = vpop.xlane.xlu0 %956
        %v958 = vrot.slane %v957, 4
        %v959 = vadd.f32 %v957, %v958
        %v960 = vrot.slane %v959, 2
        %v961 = vadd.f32 %v959, %v960
        %v962 = vrot.slane %v961, 1
        %v963 = vadd.f32 %v961, %v962
        %s964 = vtos %v963
        %v965 = vstv %s964
        %966 = vst [vmem:[%s286] sm:$0x1] %v965
        %s967 = sand.u32 %s130, 1
        %s968 = scalar_lea.sflag [#allocation3], %s967
        %s969 = sand.u32 %s130, 1
        %s970 = scalar_lea.vmem [#allocation2], %s969
        // Predicated region
        $region37: #{tpu_custom_call.1} parent=35 // pred_check
          %p971 = pneg %p140
        $region38: #{tpu_custom_call.1} parent=35 // pred_check_branch
          %973 = sbr.rel (%p971) target = $region40
        $region39: #{tpu_custom_call.1} parent=35 // pred_region
          %s975 = ssub.s32 16, 16
          %976 = vsyncadd %s968, %s975
          %s977 = smul.addr %s18, 16
          %s978 = scalar_lea.hbm %s4, %s977
          %s980 = sshll.u32 %s970, 4
          %s981 = int_to_ptr.vmem [resolvable:$true] %s980
          %983 = dma.vmem_to_hbm [thread:$0]  %s981, 16, %s978, %s968
        $region40: #{tpu_custom_call.1} parent=35 // pred_fallthru
          _
      $region36: #{tpu_custom_call.1} parent=5 // pred_fallthru
        _
      %p984 = scmp.le.s32.totalorder 2, %s13
      // Predicated region
      $region41: #{tpu_custom_call.1} parent=5 // pred_check
        %p985 = pneg %p984
      $region42: #{tpu_custom_call.1} parent=5 // pred_check_branch
        %987 = sbr.rel (%p985) target = $region44
      $region43: #{tpu_custom_call.1} parent=5 // pred_region
        %s988 = ssub.s32 %s13, 2
        // Predicated region
        $region45: #{tpu_custom_call.1} parent=43 // pred_check
          %p989 = pneg %p146
        $region46: #{tpu_custom_call.1} parent=43 // pred_check_branch
          %991 = sbr.rel (%p989) target = $region48
        $region47: #{tpu_custom_call.1} parent=43 // pred_region
          %s992 = sand.u32 %s131, 1
          %s993 = scalar_lea.sflag [#allocation3], %s992
          %s994 = sand.u32 %s131, 1
          %s995 = scalar_lea.vmem [#allocation2], %s994
          %996 = dma.done %s993, 16
        $region48: #{tpu_custom_call.1} parent=43 // pred_fallthru
          _
      $region44: #{tpu_custom_call.1} parent=5 // pred_fallthru
        _
    $region6: #{tpu_custom_call.1} parent=1 // loop_footer
      %s17 = sadd.s32 1, %s13
    $region7: #{tpu_custom_call.1} parent=1 // loop_footer_branch
      %12 = sbr.rel target = $region3
    $region8: #{tpu_custom_call.1} parent=1 // loop_exit
      _
    %997 = vsyncpa [#allocation3], 1
    %s998 = scalar_lea.sflag [#allocation3], 1
    %999 = vsyncpa %s998, 1

</llo_original>
